<compile_context>
chip_gen: v7x
topology: tpu7x:2x2x1
jax: 0.10.0
libtpu: 0.0.40
codegen_flags: <defaults>
</compile_context>

<pallas_src>
import jax
import jax.numpy as jnp
from jax.experimental import pallas as pl
from jax.experimental.pallas import tpu as pltpu


def _round_up(n, m):
    return ((n + m - 1) // m) * m


def _mish(z):
    # mish(z) = z * tanh(softplus(z)) = z * n / (n + 2)  with  n = e^z (e^z + 2).
    # One EUP exp + one approx reciprocal. Clamp the exp argument so n stays finite
    # (for z > 40, n/(n+2) == 1 to f32 precision, so mish(z) -> z as required).
    zc = jnp.minimum(z, 40.0)
    w = jnp.exp(zc)
    n = w * (w + 2.0)
    return z * n * pl.reciprocal(n + 2.0, approx=True)


def _make_kernel(hp, lp):
    """hp / lp: padded hidden / label widths (multiples of 128, static)."""

    def mlp_kernel(x_ref, w1_ref, w2_ref, w3_ref, wo_ref, b_ref, out_ref):
        # Biases kept in f32; weights are bf16; MXU accumulates in f32.
        b1 = b_ref[0:1, :hp]
        b2 = b_ref[1:2, :hp]
        b3 = b_ref[2:3, :hp]
        bo = b_ref[3:4, :lp]

        x = x_ref[...].astype(jnp.bfloat16)   # BN already folded into w1/b1
        h = _mish(jnp.dot(x, w1_ref[...], preferred_element_type=jnp.float32) + b1)
        h = _mish(jnp.dot(h.astype(jnp.bfloat16), w2_ref[...],
                          preferred_element_type=jnp.float32) + b2)
        h = _mish(jnp.dot(h.astype(jnp.bfloat16), w3_ref[...],
                          preferred_element_type=jnp.float32) + b3)
        out = jnp.dot(h.astype(jnp.bfloat16), wo_ref[...],
                      preferred_element_type=jnp.float32) + bo
        out_ref[...] = out.astype(out_ref.dtype)

    return mlp_kernel


def _prepare_params(params):
    """Fold BN into dense1, pad widths to multiples of 128, cast weights to bf16,
    stack biases into one array."""
    d_in, h = params["w1"].shape
    n_labels = params["wo"].shape[1]
    hp = _round_up(h, 128)
    lp = _round_up(n_labels, 128)
    wcols = max(hp, lp)

    # Fold BatchNorm (eval) scale/shift into the first linear layer.
    scale = params["bn_scale"].reshape(d_in, 1)   # per-input-feature scale
    shift = params["bn_shift"].reshape(1, d_in)   # per-input-feature shift
    w1 = scale * params["w1"]
    b1 = shift @ params["w1"] + params["b1"]

    def pad2(w, rows, cols):
        return jnp.pad(w, ((0, rows - w.shape[0]), (0, cols - w.shape[1])))

    w1p = pad2(w1, d_in, hp).astype(jnp.bfloat16)
    w2p = pad2(params["w2"], hp, hp).astype(jnp.bfloat16)
    w3p = pad2(params["w3"], hp, hp).astype(jnp.bfloat16)
    wop = pad2(params["wo"], hp, lp).astype(jnp.bfloat16)

    def padb(b):
        b = b.reshape(1, -1)
        return jnp.pad(b, ((0, 0), (0, wcols - b.shape[-1])))

    biases = jnp.concatenate(
        [padb(b1), padb(params["b2"]), padb(params["b3"]), padb(params["bo"])],
        axis=0).astype(jnp.float32)

    return w1p, w2p, w3p, wop, biases, hp, lp


def _pick_tile(batch, cap=512):
    # Largest tile <= cap that divides batch and is a multiple of 8
    # (or the whole batch if nothing else works). Keeps >=2 grid steps
    # at large batch for v7x megacore and bounds VMEM per step.
    t = min(batch, cap)
    for cand in range(t, 0, -1):
        if batch % cand == 0 and (cand % 8 == 0 or cand == batch):
            return cand
    return batch


def model_forward(x, params, *, tile_b=None):
    """x: (B, D_in) float32. params: dict of BN + linear params (f32)."""
    batch, d_in = x.shape
    n_labels = params["wo"].shape[1]

    w1p, w2p, w3p, wop, biases, hp, lp = _prepare_params(params)

    if tile_b is None:
        tile_b = _pick_tile(batch)
    assert batch % tile_b == 0
    grid = (batch // tile_b,)

    def full_spec(shape):
        return pl.BlockSpec(shape, lambda i: (0,) * len(shape))

    out_padded = pl.pallas_call(
        _make_kernel(hp, lp),
        out_shape=jax.ShapeDtypeStruct((batch, lp), jnp.float32),
        grid=grid,
        in_specs=[
            pl.BlockSpec((tile_b, d_in), lambda i: (i, 0)),   # x (batch-tiled)
            full_spec(w1p.shape),                             # dense1 (BN folded)
            full_spec(w2p.shape),                             # dense2
            full_spec(w3p.shape),                             # dense3
            full_spec(wop.shape),                             # out
            full_spec(biases.shape),                          # stacked biases
        ],
        out_specs=pl.BlockSpec((tile_b, lp), lambda i: (i, 0)),
        compiler_params=pltpu.CompilerParams(
            dimension_semantics=("parallel",)),
    )(x, w1p, w2p, w3p, wop, biases)

    return out_padded[:, :n_labels]


def init_params(key, input_shape, n_hidden, num_of_labels):
    ks = jax.random.split(key, 12)
    eps = 1e-5

    # BatchNorm1d parameters / running stats (deterministic synthetic values).
    gamma = 1.0 + 0.1 * jax.random.normal(ks[0], (input_shape,), jnp.float32)
    beta = 0.1 * jax.random.normal(ks[1], (input_shape,), jnp.float32)
    running_mean = 0.05 * jax.random.normal(ks[2], (input_shape,), jnp.float32)
    running_var = 1.0 + 0.1 * jax.random.uniform(ks[3], (input_shape,), jnp.float32)

    inv_std = 1.0 / jnp.sqrt(running_var + eps)
    bn_scale = (gamma * inv_std).reshape(1, input_shape)
    bn_shift = (beta - gamma * running_mean * inv_std).reshape(1, input_shape)

    def linear(kw, kb, fan_in, fan_out):
        bound = 1.0 / jnp.sqrt(fan_in)
        w = jax.random.uniform(kw, (fan_in, fan_out), jnp.float32, -bound, bound)
        b = jax.random.uniform(kb, (1, fan_out), jnp.float32, -bound, bound)
        return w, b

    w1, b1 = linear(ks[4], ks[5], input_shape, n_hidden)
    w2, b2 = linear(ks[6], ks[7], n_hidden, n_hidden)
    w3, b3 = linear(ks[8], ks[9], n_hidden, n_hidden)
    wo, bo = linear(ks[10], ks[11], n_hidden, num_of_labels)

    return dict(bn_scale=bn_scale, bn_shift=bn_shift,
                w1=w1, b1=b1, w2=w2, b2=b2, w3=w3, b3=b3, wo=wo, bo=bo)


def reference_forward(x, p):
    # Exact f32 reference (un-folded BN, exact mish) for correctness checking.
    def mish(z):
        return z * jnp.tanh(jax.nn.softplus(z))
    h = x * p["bn_scale"] + p["bn_shift"]
    h = mish(h @ p["w1"] + p["b1"])
    h = mish(h @ p["w2"] + p["b2"])
    h = mish(h @ p["w3"] + p["b3"])
    return h @ p["wo"] + p["bo"]


if __name__ == "__main__":
    key = jax.random.PRNGKey(0)
    k_x, k_p = jax.random.split(key)

    B, D_in, H, L = 8, 32, 64, 16   # batch, input_shape, n_hidden, num_of_labels
    x = jax.random.normal(k_x, (B, D_in), jnp.float32)
    params = init_params(k_p, D_in, H, L)

    out = model_forward(x, params)
    out = jax.block_until_ready(out)

    ref = reference_forward(x, params)
    assert out.shape == (B, L)
    # bf16 MXU operands + approx reciprocal in mish -> loosened tolerance vs f32 ref.
    assert jnp.allclose(out, ref, atol=5e-2, rtol=5e-2), "mismatch vs JAX reference"

    print("KERNEL_OK")
</pallas_src>

<mosaic_0001>
module attributes {stable_mosaic.version = 11 : i64} {
  func.func @mlp_kernel(%arg0: i32, %arg1: memref<8x32xf32, #tpu.memory_space<vmem>>, %arg2: memref<32x128xbf16, #tpu.memory_space<vmem>>, %arg3: memref<128x128xbf16, #tpu.memory_space<vmem>>, %arg4: memref<128x128xbf16, #tpu.memory_space<vmem>>, %arg5: memref<128x128xbf16, #tpu.memory_space<vmem>>, %arg6: memref<4x128xf32, #tpu.memory_space<vmem>>, %arg7: memref<8x128xf32, #tpu.memory_space<vmem>>) attributes {dimension_semantics = [#tpu.dimension_semantics<parallel>], iteration_bounds = array<i64: 1>, scalar_prefetch = 0 : i64, scratch_operands = 0 : i64, tpu.core_type = #tpu.core_type<tc>, window_params = [{transform_indices = @transform_0, window_bounds = array<i64: 8, 32>}, {pipeline_mode = #tpu.pipeline_mode<synchronous>, transform_indices = @transform_1, window_bounds = array<i64: 32, 128>}, {pipeline_mode = #tpu.pipeline_mode<synchronous>, transform_indices = @transform_2, window_bounds = array<i64: 128, 128>}, {pipeline_mode = #tpu.pipeline_mode<synchronous>, transform_indices = @transform_3, window_bounds = array<i64: 128, 128>}, {pipeline_mode = #tpu.pipeline_mode<synchronous>, transform_indices = @transform_4, window_bounds = array<i64: 128, 128>}, {pipeline_mode = #tpu.pipeline_mode<synchronous>, transform_indices = @transform_5, window_bounds = array<i64: 4, 128>}, {transform_indices = @transform_6, window_bounds = array<i64: 8, 128>}]} {
    %c0 = arith.constant 0 : index
    %c0_0 = arith.constant 0 : index
    %0 = vector.load %arg6[%c0, %c0_0] : memref<4x128xf32, #tpu.memory_space<vmem>>, vector<1x128xf32>
    %c1 = arith.constant 1 : index
    %c0_1 = arith.constant 0 : index
    %1 = vector.load %arg6[%c1, %c0_1] : memref<4x128xf32, #tpu.memory_space<vmem>>, vector<1x128xf32>
    %c2 = arith.constant 2 : index
    %c0_2 = arith.constant 0 : index
    %2 = vector.load %arg6[%c2, %c0_2] : memref<4x128xf32, #tpu.memory_space<vmem>>, vector<1x128xf32>
    %c3 = arith.constant 3 : index
    %c0_3 = arith.constant 0 : index
    %3 = vector.load %arg6[%c3, %c0_3] : memref<4x128xf32, #tpu.memory_space<vmem>>, vector<1x128xf32>
    %c0_4 = arith.constant 0 : index
    %c0_5 = arith.constant 0 : index
    %4 = vector.load %arg1[%c0_4, %c0_5] : memref<8x32xf32, #tpu.memory_space<vmem>>, vector<8x32xf32>
    %5 = arith.truncf %4 : vector<8x32xf32> to vector<8x32xbf16>
    %c0_6 = arith.constant 0 : index
    %c0_7 = arith.constant 0 : index
    %6 = vector.load %arg2[%c0_6, %c0_7] : memref<32x128xbf16, #tpu.memory_space<vmem>>, vector<32x128xbf16>
    %cst = arith.constant dense<0.000000e+00> : vector<8x128xf32>
    %7 = tpu.matmul %5, %6, %cst {dimension_numbers = #tpu.dot_dimension_numbers<[1], [0], [0], [1], [0, 0, 1, 1], [], []>} : vector<8x32xbf16>, vector<32x128xbf16>, vector<8x128xf32> -> vector<8x128xf32>
    %8 = vector.broadcast %0 : vector<1x128xf32> to vector<8x128xf32>
    %9 = arith.addf %7, %8 : vector<8x128xf32>
    %cst_8 = arith.constant 4.000000e+01 : f32
    %10 = vector.broadcast %cst_8 : f32 to vector<8x128xf32>
    %11 = arith.minimumf %9, %10 : vector<8x128xf32>
    %12 = math.exp %11 : vector<8x128xf32>
    %cst_9 = arith.constant 2.000000e+00 : f32
    %13 = vector.broadcast %cst_9 : f32 to vector<8x128xf32>
    %14 = arith.addf %12, %13 : vector<8x128xf32>
    %15 = arith.mulf %12, %14 : vector<8x128xf32>
    %16 = arith.mulf %9, %15 : vector<8x128xf32>
    %cst_10 = arith.constant 2.000000e+00 : f32
    %17 = vector.broadcast %cst_10 : f32 to vector<8x128xf32>
    %18 = arith.addf %15, %17 : vector<8x128xf32>
    %19 = tpu.reciprocal %18 {approx = true} : vector<8x128xf32> -> vector<8x128xf32>
    %20 = arith.mulf %16, %19 : vector<8x128xf32>
    %21 = arith.truncf %20 : vector<8x128xf32> to vector<8x128xbf16>
    %c0_11 = arith.constant 0 : index
    %c0_12 = arith.constant 0 : index
    %22 = vector.load %arg3[%c0_11, %c0_12] : memref<128x128xbf16, #tpu.memory_space<vmem>>, vector<128x128xbf16>
    %cst_13 = arith.constant dense<0.000000e+00> : vector<8x128xf32>
    %23 = tpu.matmul %21, %22, %cst_13 {dimension_numbers = #tpu.dot_dimension_numbers<[1], [0], [0], [1], [0, 0, 1, 1], [], []>} : vector<8x128xbf16>, vector<128x128xbf16>, vector<8x128xf32> -> vector<8x128xf32>
    %24 = vector.broadcast %1 : vector<1x128xf32> to vector<8x128xf32>
    %25 = arith.addf %23, %24 : vector<8x128xf32>
    %cst_14 = arith.constant 4.000000e+01 : f32
    %26 = vector.broadcast %cst_14 : f32 to vector<8x128xf32>
    %27 = arith.minimumf %25, %26 : vector<8x128xf32>
    %28 = math.exp %27 : vector<8x128xf32>
    %cst_15 = arith.constant 2.000000e+00 : f32
    %29 = vector.broadcast %cst_15 : f32 to vector<8x128xf32>
    %30 = arith.addf %28, %29 : vector<8x128xf32>
    %31 = arith.mulf %28, %30 : vector<8x128xf32>
    %32 = arith.mulf %25, %31 : vector<8x128xf32>
    %cst_16 = arith.constant 2.000000e+00 : f32
    %33 = vector.broadcast %cst_16 : f32 to vector<8x128xf32>
    %34 = arith.addf %31, %33 : vector<8x128xf32>
    %35 = tpu.reciprocal %34 {approx = true} : vector<8x128xf32> -> vector<8x128xf32>
    %36 = arith.mulf %32, %35 : vector<8x128xf32>
    %37 = arith.truncf %36 : vector<8x128xf32> to vector<8x128xbf16>
    %c0_17 = arith.constant 0 : index
    %c0_18 = arith.constant 0 : index
    %38 = vector.load %arg4[%c0_17, %c0_18] : memref<128x128xbf16, #tpu.memory_space<vmem>>, vector<128x128xbf16>
    %cst_19 = arith.constant dense<0.000000e+00> : vector<8x128xf32>
    %39 = tpu.matmul %37, %38, %cst_19 {dimension_numbers = #tpu.dot_dimension_numbers<[1], [0], [0], [1], [0, 0, 1, 1], [], []>} : vector<8x128xbf16>, vector<128x128xbf16>, vector<8x128xf32> -> vector<8x128xf32>
    %40 = vector.broadcast %2 : vector<1x128xf32> to vector<8x128xf32>
    %41 = arith.addf %39, %40 : vector<8x128xf32>
    %cst_20 = arith.constant 4.000000e+01 : f32
    %42 = vector.broadcast %cst_20 : f32 to vector<8x128xf32>
    %43 = arith.minimumf %41, %42 : vector<8x128xf32>
    %44 = math.exp %43 : vector<8x128xf32>
    %cst_21 = arith.constant 2.000000e+00 : f32
    %45 = vector.broadcast %cst_21 : f32 to vector<8x128xf32>
    %46 = arith.addf %44, %45 : vector<8x128xf32>
    %47 = arith.mulf %44, %46 : vector<8x128xf32>
    %48 = arith.mulf %41, %47 : vector<8x128xf32>
    %cst_22 = arith.constant 2.000000e+00 : f32
    %49 = vector.broadcast %cst_22 : f32 to vector<8x128xf32>
    %50 = arith.addf %47, %49 : vector<8x128xf32>
    %51 = tpu.reciprocal %50 {approx = true} : vector<8x128xf32> -> vector<8x128xf32>
    %52 = arith.mulf %48, %51 : vector<8x128xf32>
    %53 = arith.truncf %52 : vector<8x128xf32> to vector<8x128xbf16>
    %c0_23 = arith.constant 0 : index
    %c0_24 = arith.constant 0 : index
    %54 = vector.load %arg5[%c0_23, %c0_24] : memref<128x128xbf16, #tpu.memory_space<vmem>>, vector<128x128xbf16>
    %cst_25 = arith.constant dense<0.000000e+00> : vector<8x128xf32>
    %55 = tpu.matmul %53, %54, %cst_25 {dimension_numbers = #tpu.dot_dimension_numbers<[1], [0], [0], [1], [0, 0, 1, 1], [], []>} : vector<8x128xbf16>, vector<128x128xbf16>, vector<8x128xf32> -> vector<8x128xf32>
    %56 = vector.broadcast %3 : vector<1x128xf32> to vector<8x128xf32>
    %57 = arith.addf %55, %56 : vector<8x128xf32>
    %c0_26 = arith.constant 0 : index
    %c0_27 = arith.constant 0 : index
    %58 = vector.load %arg7[%c0_26, %c0_27] : memref<8x128xf32, #tpu.memory_space<vmem>>, vector<8x128xf32>
    tpu.vector_store %arg7[%c0_26, %c0_27], %57 {strides = array<i32>} : memref<8x128xf32, #tpu.memory_space<vmem>>, vector<8x128xf32>,
    return
  }
  func.func @transform_0(%arg0: i32) -> (i32, i32) {
    %c0_i32 = arith.constant 0 : i32
    %c0_i32_0 = arith.constant 0 : i32
    return %arg0, %c0_i32 : i32, i32
  }
  func.func @transform_1(%arg0: i32) -> (i32, i32) {
    %c0_i32 = arith.constant 0 : i32
    %c0_i32_0 = arith.constant 0 : i32
    %c0_i32_1 = arith.constant 0 : i32
    return %c0_i32, %c0_i32_0 : i32, i32
  }
  func.func @transform_2(%arg0: i32) -> (i32, i32) {
    %c0_i32 = arith.constant 0 : i32
    %c0_i32_0 = arith.constant 0 : i32
    %c0_i32_1 = arith.constant 0 : i32
    return %c0_i32, %c0_i32_0 : i32, i32
  }
  func.func @transform_3(%arg0: i32) -> (i32, i32) {
    %c0_i32 = arith.constant 0 : i32
    %c0_i32_0 = arith.constant 0 : i32
    %c0_i32_1 = arith.constant 0 : i32
    return %c0_i32, %c0_i32_0 : i32, i32
  }
  func.func @transform_4(%arg0: i32) -> (i32, i32) {
    %c0_i32 = arith.constant 0 : i32
    %c0_i32_0 = arith.constant 0 : i32
    %c0_i32_1 = arith.constant 0 : i32
    return %c0_i32, %c0_i32_0 : i32, i32
  }
  func.func @transform_5(%arg0: i32) -> (i32, i32) {
    %c0_i32 = arith.constant 0 : i32
    %c0_i32_0 = arith.constant 0 : i32
    %c0_i32_1 = arith.constant 0 : i32
    return %c0_i32, %c0_i32_0 : i32, i32
  }
  func.func @transform_6(%arg0: i32) -> (i32, i32) {
    %c0_i32 = arith.constant 0 : i32
    %c0_i32_0 = arith.constant 0 : i32
    return %arg0, %c0_i32 : i32, i32
  }
}

</mosaic_0001>

<llo_original>
// kernel: tpu_custom_call.1
$region0: #{tpu_custom_call.1}
  #allocation0 [shape = 'u32[]', space=smem, size = 0x4, offset = 0x4, fixed_abs, tag = 'smem constant byte address 0x4 - core index']
  #allocation1 [shape = 'u32[144,128]{1,0:T(1,128)}', space=vmem, size = 0x12000, scoped, tag = 'internal scratch']
  %s0 = inlined_call_operand.hbm [shape: f32[8,32], index: 0, kind: input, shape index: {}]
  %s1 = inlined_call_operand.hbm [shape: bf16[32,128], index: 1, kind: input, shape index: {}]
  %s2 = inlined_call_operand.hbm [shape: bf16[128,128], index: 2, kind: input, shape index: {}]
  %s3 = inlined_call_operand.hbm [shape: bf16[128,128], index: 3, kind: input, shape index: {}]
  %s4 = inlined_call_operand.hbm [shape: bf16[128,128], index: 4, kind: input, shape index: {}]
  %s5 = inlined_call_operand.vmem [shape: f32[4,128], index: 5, kind: input, shape index: {}]
  %s6 = inlined_call_operand.hbm [shape: f32[8,128], index: 6, kind: output, shape index: {}]
  %s7 = sld [smem:[#allocation0]]
  $region54: #{tpu_custom_call.1} parent=0
    _
  %s9 = ssub.s32 1, %s7
  %s10 = scalar_select 0, %s9, %s7
  $region1: #{tpu_custom_call.1} parent=0
    #allocation2 [shape = 'u8[4096]{0}', space=vmem, size = 0x1000, scoped, tag = 'input window, operand 0, single buffered']
    #allocation3 [shape = 's32[1]{0}', space=sflag, size = 0x4, scoped, tag = 'scoped memory for tpu_custom_call.1']
    #allocation4 [shape = 's32[1]{0}', space=sflag, size = 0x4, scoped, tag = 'scoped memory for tpu_custom_call.1']
    #allocation5 [shape = 'u8[8192]{0}', space=vmem, size = 0x2000, scoped, tag = 'input window, operand 1, single buffered']
    #allocation6 [shape = 's32[1]{0}', space=sflag, size = 0x4, scoped, tag = 'scoped memory for tpu_custom_call.1']
    #allocation7 [shape = 'u8[32768]{0}', space=vmem, size = 0x8000, scoped, tag = 'input window, operand 2, single buffered']
    #allocation8 [shape = 'u8[32768]{0}', space=vmem, size = 0x8000, scoped, tag = 'input window, operand 3, single buffered']
    #allocation9 [shape = 's32[1]{0}', space=sflag, size = 0x4, scoped, tag = 'scoped memory for tpu_custom_call.1']
    #allocation10 [shape = 'u8[32768]{0}', space=vmem, size = 0x8000, scoped, tag = 'input window, operand 4, single buffered']
    #allocation11 [shape = 'u8[4096]{0}', space=vmem, size = 0x1000, scoped, tag = 'output window, operand 0, single buffered']
    %11 = vsyncpa [#allocation3], 0
    %12 = vsyncpa [#allocation6], 0
    %13 = vsyncpa [#allocation9], 0
    %14 = vsyncpa [#allocation4], 0
    // Predicated region
    $region2: #{tpu_custom_call.1} parent=1 // pred_check
      _
    $region3: #{tpu_custom_call.1} parent=1 // pred_check_branch
      %16 = sbr.rel (0) target = $region5
    $region4: #{tpu_custom_call.1} parent=1 // pred_region
      %s18 = ssub.s32 128, 128
      %19 = vsyncadd [#allocation3], %s18
      %s21 = sshll.u32 [#allocation2], 4
      %s22 = int_to_ptr.vmem [resolvable:$true] %s21
      %24 = dma.hbm_to_vmem [thread:$0]  %s0, 128, %s22, [#allocation3]
    $region5: #{tpu_custom_call.1} parent=1 // pred_fallthru
      _
    // Predicated region
    $region6: #{tpu_custom_call.1} parent=1 // pred_check
      _
    $region7: #{tpu_custom_call.1} parent=1 // pred_check_branch
      %26 = sbr.rel (0) target = $region9
    $region8: #{tpu_custom_call.1} parent=1 // pred_region
      %s28 = ssub.s32 256, 256
      %29 = vsyncadd [#allocation6], %s28
      %s30 = sshll.u32 [#allocation5], 4
      %s31 = int_to_ptr.vmem [resolvable:$true] %s30
      %36 = dma.hbm_to_vmem [thread:$0]  %s1, 256, %s31, [#allocation6], 64, 64, 4
    $region9: #{tpu_custom_call.1} parent=1 // pred_fallthru
      _
    // Predicated region
    $region10: #{tpu_custom_call.1} parent=1 // pred_check
      _
    $region11: #{tpu_custom_call.1} parent=1 // pred_check_branch
      %38 = sbr.rel (0) target = $region13
    $region12: #{tpu_custom_call.1} parent=1 // pred_region
      %s40 = ssub.s32 1024, 1024
      %41 = vsyncadd [#allocation6], %s40
      %s42 = sshll.u32 [#allocation7], 4
      %s43 = int_to_ptr.vmem [resolvable:$true] %s42
      %48 = dma.hbm_to_vmem [thread:$0]  %s2, 1024, %s43, [#allocation6], 64, 64, 4
    $region13: #{tpu_custom_call.1} parent=1 // pred_fallthru
      _
    // Predicated region
    $region14: #{tpu_custom_call.1} parent=1 // pred_check
      _
    $region15: #{tpu_custom_call.1} parent=1 // pred_check_branch
      %50 = sbr.rel (0) target = $region17
    $region16: #{tpu_custom_call.1} parent=1 // pred_region
      %s52 = ssub.s32 1024, 1024
      %53 = vsyncadd [#allocation9], %s52
      %s54 = sshll.u32 [#allocation8], 4
      %s55 = int_to_ptr.vmem [resolvable:$true] %s54
      %60 = dma.hbm_to_vmem [thread:$0]  %s3, 1024, %s55, [#allocation9], 64, 64, 4
    $region17: #{tpu_custom_call.1} parent=1 // pred_fallthru
      _
    // Predicated region
    $region18: #{tpu_custom_call.1} parent=1 // pred_check
      _
    $region19: #{tpu_custom_call.1} parent=1 // pred_check_branch
      %62 = sbr.rel (0) target = $region21
    $region20: #{tpu_custom_call.1} parent=1 // pred_region
      %s64 = ssub.s32 1024, 1024
      %65 = vsyncadd [#allocation9], %s64
      %s66 = sshll.u32 [#allocation10], 4
      %s67 = int_to_ptr.vmem [resolvable:$true] %s66
      %72 = dma.hbm_to_vmem [thread:$0]  %s4, 1024, %s67, [#allocation9], 64, 64, 4
    $region21: #{tpu_custom_call.1} parent=1 // pred_fallthru
      _
    // Predicated region
    $region22: #{tpu_custom_call.1} parent=1 // pred_check
      _
    $region23: #{tpu_custom_call.1} parent=1 // pred_check_branch
      %74 = sbr.rel (0) target = $region25
    $region24: #{tpu_custom_call.1} parent=1 // pred_region
      _
    $region25: #{tpu_custom_call.1} parent=1 // pred_fallthru
      _
    // Predicated region
    $region26: #{tpu_custom_call.1} parent=1 // pred_check
      _
    $region27: #{tpu_custom_call.1} parent=1 // pred_check_branch
      %76 = sbr.rel (0) target = $region29
    $region28: #{tpu_custom_call.1} parent=1 // pred_region
      %77 = dma.done [#allocation3], 128
    $region29: #{tpu_custom_call.1} parent=1 // pred_fallthru
      _
    // Predicated region
    $region30: #{tpu_custom_call.1} parent=1 // pred_check
      _
    $region31: #{tpu_custom_call.1} parent=1 // pred_check_branch
      %79 = sbr.rel (0) target = $region33
    $region32: #{tpu_custom_call.1} parent=1 // pred_region
      %80 = dma.done [#allocation6], 256
    $region33: #{tpu_custom_call.1} parent=1 // pred_fallthru
      _
    // Predicated region
    $region34: #{tpu_custom_call.1} parent=1 // pred_check
      _
    $region35: #{tpu_custom_call.1} parent=1 // pred_check_branch
      %82 = sbr.rel (0) target = $region37
    $region36: #{tpu_custom_call.1} parent=1 // pred_region
      %83 = dma.done [#allocation6], 1024
    $region37: #{tpu_custom_call.1} parent=1 // pred_fallthru
      _
    // Predicated region
    $region38: #{tpu_custom_call.1} parent=1 // pred_check
      _
    $region39: #{tpu_custom_call.1} parent=1 // pred_check_branch
      %85 = sbr.rel (0) target = $region41
    $region40: #{tpu_custom_call.1} parent=1 // pred_region
      %86 = dma.done [#allocation9], 1024
    $region41: #{tpu_custom_call.1} parent=1 // pred_fallthru
      _
    // Predicated region
    $region42: #{tpu_custom_call.1} parent=1 // pred_check
      _
    $region43: #{tpu_custom_call.1} parent=1 // pred_check_branch
      %88 = sbr.rel (0) target = $region45
    $region44: #{tpu_custom_call.1} parent=1 // pred_region
      %89 = dma.done [#allocation9], 1024
    $region45: #{tpu_custom_call.1} parent=1 // pred_fallthru
      _
    %v91 = vld [vmem:[%s5] sm:$0x1]
    %v92 = vld [vmem:[%s5 + $0x1] sm:$0x1]
    %v93 = vld [vmem:[%s5 + $0x2] sm:$0x1]
    %v94 = vld [vmem:[%s5 + $0x3] sm:$0x1]
    %v95 = vld [vmem:[#allocation2] sm:$0xff]
    %v96 = vpack.c.bf16 %v95, %v95
    %v97 = vld [vmem:[#allocation5] sm:$0xf]
    %v98 = vld [vmem:[#allocation5 + $0x4] sm:$0xf]
    %v99 = vld [vmem:[#allocation5 + $0x8] sm:$0xf]
    %v100 = vld [vmem:[#allocation5 + $0xc] sm:$0xf]
    %v101 = vlaneseq
    %v102 = vshrl.u32 %v101, 7
    %v103 = vsub.s32 0, %v102
    %v104 = vrot.slane %v91, %v103
    %v109 = vunpack.c.l.b16 %v97
    %v110 = vunpack.c.l.b16 %v98
    %v111 = vunpack.c.l.b16 %v99
    %v112 = vunpack.c.l.b16 %v100
    %v113 = vpack.c.b16 %v110, %v109
    %v114 = vpack.c.b16 %v112, %v111
    %vm117 = vcmask 261120
    %v119 = vsel %vm117, %v96, 0
    %121 = vmatprep.subr.bf16.mxu0 0
    %122 = vmatpush1.bf16.msra.mxu0 %v113
    %123 = vmatprep.subr.bf16.mxu0 0
    %124 = vmatpush1.bf16.msra.mxu0 %v114
    %125 = vmatprep.subr.bf16.mxu0 0
    %126 = vmatpush1.bf16.msra.mxu0 0
    %127 = vmatprep.subr.bf16.mxu0 0
    %128 = vmatpush1.bf16.msra.mxu0 0
    %129 = vmatprep.subr.bf16.mxu0 0
    %130 = vmatpush1.bf16.msra.mxu0 0
    %131 = vmatprep.subr.bf16.mxu0 0
    %132 = vmatpush1.bf16.msra.mxu0 0
    %133 = vmatprep.subr.bf16.mxu0 0
    %134 = vmatpush1.bf16.msra.mxu0 0
    %135 = vmatprep.subr.bf16.mxu0 0
    %136 = vmatpush1.bf16.msra.mxu0 0
    %137 = vmatprep.subr.bf16.mxu0 0
    %138 = vmatpush1.bf16.msra.mxu0 0
    %139 = vmatprep.subr.bf16.mxu0 0
    %140 = vmatpush1.bf16.msra.mxu0 0
    %141 = vmatprep.subr.bf16.mxu0 0
    %142 = vmatpush1.bf16.msra.mxu0 0
    %143 = vmatprep.subr.bf16.mxu0 0
    %144 = vmatpush1.bf16.msra.mxu0 0
    %145 = vmatprep.subr.bf16.mxu0 0
    %146 = vmatpush1.bf16.msra.mxu0 0
    %147 = vmatprep.subr.bf16.mxu0 0
    %148 = vmatpush1.bf16.msra.mxu0 0
    %149 = vmatprep.subr.bf16.mxu0 0
    %150 = vmatpush1.bf16.msra.mxu0 0
    %151 = vmatprep.subr.bf16.mxu0 0
    %152 = vmatpush1.bf16.msra.mxu0 0
    %153 = vmatprep.mubr.bf16.mxu0 0
    %154 = vmatmul.mubr.bf16.gmra.mrb[0].mxu0 %v119
    %v155 = vpop.f32.mrb[0].mxu0
    %v156 = vadd.f32 %v104, %v155
    %v157 = vpop.f32.mrb[0].mxu0
    %v158 = vpop.f32.mrb[0].mxu0
    %v159 = vpop.f32.mrb[0].mxu0
    %160 = vdwg.mxu0
    %v161 = vmin.f32 %v156, 40.0
    %v162 = vmul.f32 %v161, 1.442695
    %v163 = vpow.pop %v162
    %v164 = vadd.f32 %v163, 2.0
    %v165 = vmul.f32 %v163, %v164
    %v166 = vmul.f32 %v156, %v165
    %v167 = vadd.f32 %v165, 2.0
    %v168 = vrcp.pop %v167
    %v169 = vmul.f32 %v166, %v168
    %v170 = vpack.c.bf16 %v169, %v169
    %v171 = vld [vmem:[#allocation7] sm:$0xf]
    %v172 = vld [vmem:[#allocation7 + $0x4] sm:$0xf]
    %v173 = vld [vmem:[#allocation7 + $0x8] sm:$0xf]
    %v174 = vld [vmem:[#allocation7 + $0xc] sm:$0xf]
    %v175 = vld [vmem:[#allocation7 + $0x10] sm:$0xf]
    %v176 = vld [vmem:[#allocation7 + $0x14] sm:$0xf]
    %v177 = vld [vmem:[#allocation7 + $0x18] sm:$0xf]
    %v178 = vld [vmem:[#allocation7 + $0x1c] sm:$0xf]
    %v179 = vld [vmem:[#allocation7 + $0x20] sm:$0xf]
    %v180 = vld [vmem:[#allocation7 + $0x24] sm:$0xf]
    %v181 = vld [vmem:[#allocation7 + $0x28] sm:$0xf]
    %v182 = vld [vmem:[#allocation7 + $0x2c] sm:$0xf]
    %v183 = vld [vmem:[#allocation7 + $0x30] sm:$0xf]
    %v184 = vld [vmem:[#allocation7 + $0x34] sm:$0xf]
    %v185 = vld [vmem:[#allocation7 + $0x38] sm:$0xf]
    %v186 = vld [vmem:[#allocation7 + $0x3c] sm:$0xf]
    %v187 = vlaneseq
    %v188 = vshrl.u32 %v187, 7
    %v189 = vsub.s32 0, %v188
    %v190 = vrot.slane %v92, %v189
    %v207 = vunpack.c.l.b16 %v171
    %v208 = vunpack.c.l.b16 %v172
    %v209 = vunpack.c.l.b16 %v173
    %v210 = vunpack.c.l.b16 %v174
    %v211 = vunpack.c.l.b16 %v175
    %v212 = vunpack.c.l.b16 %v176
    %v213 = vunpack.c.l.b16 %v177
    %v214 = vunpack.c.l.b16 %v178
    %v215 = vunpack.c.l.b16 %v179
    %v216 = vunpack.c.l.b16 %v180
    %v217 = vunpack.c.l.b16 %v181
    %v218 = vunpack.c.l.b16 %v182
    %v219 = vunpack.c.l.b16 %v183
    %v220 = vunpack.c.l.b16 %v184
    %v221 = vunpack.c.l.b16 %v185
    %v222 = vunpack.c.l.b16 %v186
    %v223 = vpack.c.b16 %v208, %v207
    %v224 = vpack.c.b16 %v210, %v209
    %v225 = vpack.c.b16 %v212, %v211
    %v226 = vpack.c.b16 %v214, %v213
    %v227 = vpack.c.b16 %v216, %v215
    %v228 = vpack.c.b16 %v218, %v217
    %v229 = vpack.c.b16 %v220, %v219
    %v230 = vpack.c.b16 %v222, %v221
    %239 = vmatprep.subr.bf16.mxu0 0
    %240 = vmatpush1.bf16.msra.mxu0 %v223
    %241 = vmatprep.subr.bf16.mxu0 0
    %242 = vmatpush1.bf16.msra.mxu0 %v224
    %243 = vmatprep.subr.bf16.mxu0 0
    %244 = vmatpush1.bf16.msra.mxu0 %v225
    %245 = vmatprep.subr.bf16.mxu0 0
    %246 = vmatpush1.bf16.msra.mxu0 %v226
    %247 = vmatprep.subr.bf16.mxu0 0
    %248 = vmatpush1.bf16.msra.mxu0 %v227
    %249 = vmatprep.subr.bf16.mxu0 0
    %250 = vmatpush1.bf16.msra.mxu0 %v228
    %251 = vmatprep.subr.bf16.mxu0 0
    %252 = vmatpush1.bf16.msra.mxu0 %v229
    %253 = vmatprep.subr.bf16.mxu0 0
    %254 = vmatpush1.bf16.msra.mxu0 %v230
    %255 = vmatprep.subr.bf16.mxu0 0
    %256 = vmatpush1.bf16.msra.mxu0 0
    %257 = vmatprep.subr.bf16.mxu0 0
    %258 = vmatpush1.bf16.msra.mxu0 0
    %259 = vmatprep.subr.bf16.mxu0 0
    %260 = vmatpush1.bf16.msra.mxu0 0
    %261 = vmatprep.subr.bf16.mxu0 0
    %262 = vmatpush1.bf16.msra.mxu0 0
    %263 = vmatprep.subr.bf16.mxu0 0
    %264 = vmatpush1.bf16.msra.mxu0 0
    %265 = vmatprep.subr.bf16.mxu0 0
    %266 = vmatpush1.bf16.msra.mxu0 0
    %267 = vmatprep.subr.bf16.mxu0 0
    %268 = vmatpush1.bf16.msra.mxu0 0
    %269 = vmatprep.subr.bf16.mxu0 0
    %270 = vmatpush1.bf16.msra.mxu0 0
    %271 = vmatprep.mubr.bf16.mxu0 0
    %272 = vmatmul.mubr.bf16.gmra.mrb[0].mxu0 %v170
    %v273 = vpop.f32.mrb[0].mxu0
    %v274 = vadd.f32 %v190, %v273
    %v275 = vpop.f32.mrb[0].mxu0
    %v276 = vpop.f32.mrb[0].mxu0
    %v277 = vpop.f32.mrb[0].mxu0
    %278 = vdwg.mxu0
    %v279 = vmin.f32 %v274, 40.0
    %v280 = vmul.f32 %v279, 1.442695
    %v281 = vpow.pop %v280
    %v282 = vadd.f32 %v281, 2.0
    %v283 = vmul.f32 %v281, %v282
    %v284 = vmul.f32 %v274, %v283
    %v285 = vadd.f32 %v283, 2.0
    %v286 = vrcp.pop %v285
    %v287 = vmul.f32 %v284, %v286
    %v288 = vpack.c.bf16 %v287, %v287
    %v289 = vld [vmem:[#allocation8] sm:$0xf]
    %v290 = vld [vmem:[#allocation8 + $0x4] sm:$0xf]
    %v291 = vld [vmem:[#allocation8 + $0x8] sm:$0xf]
    %v292 = vld [vmem:[#allocation8 + $0xc] sm:$0xf]
    %v293 = vld [vmem:[#allocation8 + $0x10] sm:$0xf]
    %v294 = vld [vmem:[#allocation8 + $0x14] sm:$0xf]
    %v295 = vld [vmem:[#allocation8 + $0x18] sm:$0xf]
    %v296 = vld [vmem:[#allocation8 + $0x1c] sm:$0xf]
    %v297 = vld [vmem:[#allocation8 + $0x20] sm:$0xf]
    %v298 = vld [vmem:[#allocation8 + $0x24] sm:$0xf]
    %v299 = vld [vmem:[#allocation8 + $0x28] sm:$0xf]
    %v300 = vld [vmem:[#allocation8 + $0x2c] sm:$0xf]
    %v301 = vld [vmem:[#allocation8 + $0x30] sm:$0xf]
    %v302 = vld [vmem:[#allocation8 + $0x34] sm:$0xf]
    %v303 = vld [vmem:[#allocation8 + $0x38] sm:$0xf]
    %v304 = vld [vmem:[#allocation8 + $0x3c] sm:$0xf]
    %v305 = vlaneseq
    %v306 = vshrl.u32 %v305, 7
    %v307 = vsub.s32 0, %v306
    %v308 = vrot.slane %v93, %v307
    %v325 = vunpack.c.l.b16 %v289
    %v326 = vunpack.c.l.b16 %v290
    %v327 = vunpack.c.l.b16 %v291
    %v328 = vunpack.c.l.b16 %v292
    %v329 = vunpack.c.l.b16 %v293
    %v330 = vunpack.c.l.b16 %v294
    %v331 = vunpack.c.l.b16 %v295
    %v332 = vunpack.c.l.b16 %v296
    %v333 = vunpack.c.l.b16 %v297
    %v334 = vunpack.c.l.b16 %v298
    %v335 = vunpack.c.l.b16 %v299
    %v336 = vunpack.c.l.b16 %v300
    %v337 = vunpack.c.l.b16 %v301
    %v338 = vunpack.c.l.b16 %v302
    %v339 = vunpack.c.l.b16 %v303
    %v340 = vunpack.c.l.b16 %v304
    %v341 = vpack.c.b16 %v326, %v325
    %v342 = vpack.c.b16 %v328, %v327
    %v343 = vpack.c.b16 %v330, %v329
    %v344 = vpack.c.b16 %v332, %v331
    %v345 = vpack.c.b16 %v334, %v333
    %v346 = vpack.c.b16 %v336, %v335
    %v347 = vpack.c.b16 %v338, %v337
    %v348 = vpack.c.b16 %v340, %v339
    %357 = vmatprep.subr.bf16.mxu0 0
    %358 = vmatpush1.bf16.msra.mxu0 %v341
    %359 = vmatprep.subr.bf16.mxu0 0
    %360 = vmatpush1.bf16.msra.mxu0 %v342
    %361 = vmatprep.subr.bf16.mxu0 0
    %362 = vmatpush1.bf16.msra.mxu0 %v343
    %363 = vmatprep.subr.bf16.mxu0 0
    %364 = vmatpush1.bf16.msra.mxu0 %v344
    %365 = vmatprep.subr.bf16.mxu0 0
    %366 = vmatpush1.bf16.msra.mxu0 %v345
    %367 = vmatprep.subr.bf16.mxu0 0
    %368 = vmatpush1.bf16.msra.mxu0 %v346
    %369 = vmatprep.subr.bf16.mxu0 0
    %370 = vmatpush1.bf16.msra.mxu0 %v347
    %371 = vmatprep.subr.bf16.mxu0 0
    %372 = vmatpush1.bf16.msra.mxu0 %v348
    %373 = vmatprep.subr.bf16.mxu0 0
    %374 = vmatpush1.bf16.msra.mxu0 0
    %375 = vmatprep.subr.bf16.mxu0 0
    %376 = vmatpush1.bf16.msra.mxu0 0
    %377 = vmatprep.subr.bf16.mxu0 0
    %378 = vmatpush1.bf16.msra.mxu0 0
    %379 = vmatprep.subr.bf16.mxu0 0
    %380 = vmatpush1.bf16.msra.mxu0 0
    %381 = vmatprep.subr.bf16.mxu0 0
    %382 = vmatpush1.bf16.msra.mxu0 0
    %383 = vmatprep.subr.bf16.mxu0 0
    %384 = vmatpush1.bf16.msra.mxu0 0
    %385 = vmatprep.subr.bf16.mxu0 0
    %386 = vmatpush1.bf16.msra.mxu0 0
    %387 = vmatprep.subr.bf16.mxu0 0
    %388 = vmatpush1.bf16.msra.mxu0 0
    %389 = vmatprep.mubr.bf16.mxu0 0
    %390 = vmatmul.mubr.bf16.gmra.mrb[0].mxu0 %v288
    %v391 = vpop.f32.mrb[0].mxu0
    %v392 = vadd.f32 %v308, %v391
    %v393 = vpop.f32.mrb[0].mxu0
    %v394 = vpop.f32.mrb[0].mxu0
    %v395 = vpop.f32.mrb[0].mxu0
    %396 = vdwg.mxu0
    %v397 = vmin.f32 %v392, 40.0
    %v398 = vmul.f32 %v397, 1.442695
    %v399 = vpow.pop %v398
    %v400 = vadd.f32 %v399, 2.0
    %v401 = vmul.f32 %v399, %v400
    %v402 = vmul.f32 %v392, %v401
    %v403 = vadd.f32 %v401, 2.0
    %v404 = vrcp.pop %v403
    %v405 = vmul.f32 %v402, %v404
    %v406 = vpack.c.bf16 %v405, %v405
    %v407 = vld [vmem:[#allocation10] sm:$0xf]
    %v408 = vld [vmem:[#allocation10 + $0x4] sm:$0xf]
    %v409 = vld [vmem:[#allocation10 + $0x8] sm:$0xf]
    %v410 = vld [vmem:[#allocation10 + $0xc] sm:$0xf]
    %v411 = vld [vmem:[#allocation10 + $0x10] sm:$0xf]
    %v412 = vld [vmem:[#allocation10 + $0x14] sm:$0xf]
    %v413 = vld [vmem:[#allocation10 + $0x18] sm:$0xf]
    %v414 = vld [vmem:[#allocation10 + $0x1c] sm:$0xf]
    %v415 = vld [vmem:[#allocation10 + $0x20] sm:$0xf]
    %v416 = vld [vmem:[#allocation10 + $0x24] sm:$0xf]
    %v417 = vld [vmem:[#allocation10 + $0x28] sm:$0xf]
    %v418 = vld [vmem:[#allocation10 + $0x2c] sm:$0xf]
    %v419 = vld [vmem:[#allocation10 + $0x30] sm:$0xf]
    %v420 = vld [vmem:[#allocation10 + $0x34] sm:$0xf]
    %v421 = vld [vmem:[#allocation10 + $0x38] sm:$0xf]
    %v422 = vld [vmem:[#allocation10 + $0x3c] sm:$0xf]
    %v423 = vlaneseq
    %v424 = vshrl.u32 %v423, 7
    %v425 = vsub.s32 0, %v424
    %v426 = vrot.slane %v94, %v425
    %v443 = vunpack.c.l.b16 %v407
    %v444 = vunpack.c.l.b16 %v408
    %v445 = vunpack.c.l.b16 %v409
    %v446 = vunpack.c.l.b16 %v410
    %v447 = vunpack.c.l.b16 %v411
    %v448 = vunpack.c.l.b16 %v412
    %v449 = vunpack.c.l.b16 %v413
    %v450 = vunpack.c.l.b16 %v414
    %v451 = vunpack.c.l.b16 %v415
    %v452 = vunpack.c.l.b16 %v416
    %v453 = vunpack.c.l.b16 %v417
    %v454 = vunpack.c.l.b16 %v418
    %v455 = vunpack.c.l.b16 %v419
    %v456 = vunpack.c.l.b16 %v420
    %v457 = vunpack.c.l.b16 %v421
    %v458 = vunpack.c.l.b16 %v422
    %v459 = vpack.c.b16 %v444, %v443
    %v460 = vpack.c.b16 %v446, %v445
    %v461 = vpack.c.b16 %v448, %v447
    %v462 = vpack.c.b16 %v450, %v449
    %v463 = vpack.c.b16 %v452, %v451
    %v464 = vpack.c.b16 %v454, %v453
    %v465 = vpack.c.b16 %v456, %v455
    %v466 = vpack.c.b16 %v458, %v457
    %475 = vmatprep.subr.bf16.mxu0 0
    %476 = vmatpush1.bf16.msra.mxu0 %v459
    %477 = vmatprep.subr.bf16.mxu0 0
    %478 = vmatpush1.bf16.msra.mxu0 %v460
    %479 = vmatprep.subr.bf16.mxu0 0
    %480 = vmatpush1.bf16.msra.mxu0 %v461
    %481 = vmatprep.subr.bf16.mxu0 0
    %482 = vmatpush1.bf16.msra.mxu0 %v462
    %483 = vmatprep.subr.bf16.mxu0 0
    %484 = vmatpush1.bf16.msra.mxu0 %v463
    %485 = vmatprep.subr.bf16.mxu0 0
    %486 = vmatpush1.bf16.msra.mxu0 %v464
    %487 = vmatprep.subr.bf16.mxu0 0
    %488 = vmatpush1.bf16.msra.mxu0 %v465
    %489 = vmatprep.subr.bf16.mxu0 0
    %490 = vmatpush1.bf16.msra.mxu0 %v466
    %491 = vmatprep.subr.bf16.mxu0 0
    %492 = vmatpush1.bf16.msra.mxu0 0
    %493 = vmatprep.subr.bf16.mxu0 0
    %494 = vmatpush1.bf16.msra.mxu0 0
    %495 = vmatprep.subr.bf16.mxu0 0
    %496 = vmatpush1.bf16.msra.mxu0 0
    %497 = vmatprep.subr.bf16.mxu0 0
    %498 = vmatpush1.bf16.msra.mxu0 0
    %499 = vmatprep.subr.bf16.mxu0 0
    %500 = vmatpush1.bf16.msra.mxu0 0
    %501 = vmatprep.subr.bf16.mxu0 0
    %502 = vmatpush1.bf16.msra.mxu0 0
    %503 = vmatprep.subr.bf16.mxu0 0
    %504 = vmatpush1.bf16.msra.mxu0 0
    %505 = vmatprep.subr.bf16.mxu0 0
    %506 = vmatpush1.bf16.msra.mxu0 0
    %507 = vmatprep.mubr.bf16.mxu0 0
    %508 = vmatmul.mubr.bf16.gmra.mrb[0].mxu0 %v406
    %v509 = vpop.f32.mrb[0].mxu0
    %v510 = vadd.f32 %v426, %v509
    %v511 = vpop.f32.mrb[0].mxu0
    %v512 = vpop.f32.mrb[0].mxu0
    %v513 = vpop.f32.mrb[0].mxu0
    %514 = vdwg.mxu0
    %515 = vst [vmem:[#allocation11] sm:$0xff] %v510
    // Predicated region
    $region46: #{tpu_custom_call.1} parent=1 // pred_check
      _
    $region47: #{tpu_custom_call.1} parent=1 // pred_check_branch
      %517 = sbr.rel (0) target = $region49
    $region48: #{tpu_custom_call.1} parent=1 // pred_region
      %s519 = ssub.s32 128, 128
      %520 = vsyncadd [#allocation4], %s519
      %s522 = sshll.u32 [#allocation11], 4
      %s523 = int_to_ptr.vmem [resolvable:$true] %s522
      %525 = dma.vmem_to_hbm [thread:$0]  %s523, 128, %s6, [#allocation4]
    $region49: #{tpu_custom_call.1} parent=1 // pred_fallthru
      _
    // Predicated region
    $region50: #{tpu_custom_call.1} parent=1 // pred_check
      _
    $region51: #{tpu_custom_call.1} parent=1 // pred_check_branch
      %527 = sbr.rel (0) target = $region53
    $region52: #{tpu_custom_call.1} parent=1 // pred_region
      %528 = dma.done [#allocation4], 128
    $region53: #{tpu_custom_call.1} parent=1 // pred_fallthru
      _
    %529 = vsyncpa [#allocation3], 1
    %530 = vsyncpa [#allocation6], 1
    %531 = vsyncpa [#allocation9], 1
    %532 = vsyncpa [#allocation4], 1

</llo_original>
